<compile_context>
chip_gen: v6e
topology: v6e:2x2x1
jax: 0.10.0
libtpu: 0.0.40
codegen_flags: <defaults>
</compile_context>

<pallas_src>
import functools
import math

import jax
import jax.numpy as jnp
from jax import lax
from jax.experimental import pallas as pl
from jax.experimental.pallas import tpu as pltpu

_MiB = 1024 * 1024


def _nt_xent_denom_kernel(row_ref, col_ref, out_ref, acc_ref, *, pad_cols):
    """One (row-block, col-block) tile of the online denominator accumulation."""
    c = pl.program_id(1)
    nc = pl.num_programs(1)

    @pl.when(c == 0)
    def _():
        acc_ref[...] = jnp.zeros_like(acc_ref)

    # sim/T tile straight off the MXU: operands are already normalized and
    # scaled by 1/sqrt(T) in the wrapper (no per-tile normalization here).
    sim = lax.dot_general(
        row_ref[...], col_ref[...],
        dimension_numbers=(((1,), (1,)), ((), ())),
        preferred_element_type=jnp.float32,
    )                                                  # (tm, tn) f32
    e = jnp.exp(sim)

    # Lane-dense accumulation: VPU adds of static 128-lane chunks into a
    # (tm, 128) accumulator; the XLU reduce happens once per row block below.
    tn = e.shape[1]
    acc = acc_ref[...]
    for k in range(tn // 128):
        acc = acc + e[:, k * 128:(k + 1) * 128]
    acc_ref[...] = acc

    @pl.when(c == nc - 1)
    def _():
        # Self-similarity (diagonal) removal computed through the SAME quantized
        # operands the MXU saw, plus exact removal of the exp(0)=1 contribution
        # of zero-padded columns.
        row_f32 = row_ref[...].astype(jnp.float32)
        self_sim = jnp.sum(row_f32 * row_f32, axis=1, keepdims=True)   # (tm, 1)
        row_sum = jnp.sum(acc_ref[...], axis=1, keepdims=True)         # (tm, 1)
        denom = row_sum - jnp.exp(self_sim) - pad_cols
        out_ref[...] = jnp.log(denom)


def _round_up(x, m):
    return ((x + m - 1) // m) * m


def _vmem_budget():
    """(vmem_limit_bytes, tile_budget_bytes) derived from this chip's VMEM."""
    try:
        cap = int(pltpu.get_tpu_info().vmem_capacity_bytes)
    except Exception:  # non-TPU / older runtime: fall back to the smallest part
        cap = 64 * _MiB
    vmem_limit = (3 * cap) // 4            # ~96 MiB on v5e/v6e, ~48 MiB on v7x
    tile_budget = max(vmem_limit - 8 * _MiB, 8 * _MiB)   # compiler headroom
    return vmem_limit, tile_budget


def _pick_tiles(n, d, in_itemsize, tile_budget):
    """Largest (tm, tn) whose double-buffered footprint fits the VMEM budget.

    HBM traffic is (N/tm) full passes over reps, so tm is maximized first.
    """
    n128 = _round_up(max(n, 1), 128)

    def footprint(tm, tn):
        fp = 2 * (tm + tn) * d * in_itemsize   # double-buffered input blocks
        fp += 2 * tm * tn * 4                  # sim + exp(sim) f32 intermediates
        fp += tm * 128 * 4                     # lane-dense accumulator scratch
        fp += 2 * tm * 4                       # double-buffered output block
        return fp

    for tm in (1024, 512, 256, 128):
        if tm > n128:
            continue
        for tn in (2048, 1024, 512, 256, 128):
            if tn > n128:
                continue
            if footprint(tm, tn) <= tile_budget:
                return tm, tn
    return 128, 128


def contrastive_loss(emb_i, emb_j, temperature=0.5, *,
                     row_block=None, col_block=None,
                     matmul_dtype=jnp.bfloat16):
    """NT-Xent loss; forward semantics identical to the PyTorch ContrastiveLoss."""
    assert emb_i.shape == emb_j.shape and emb_i.ndim == 2
    B, D = emb_i.shape
    n = 2 * B
    eps = 1e-12  # F.normalize default
    inv_sqrt_t = 1.0 / math.sqrt(float(temperature))

    # --- One fused wrapper-side pass: normalize and fold in 1/sqrt(T) --------
    def normalize_scaled(x):
        x = x.astype(jnp.float32)
        norm = jnp.sqrt(jnp.sum(x * x, axis=1, keepdims=True))
        return x * (inv_sqrt_t / jnp.maximum(norm, eps))

    zi = normalize_scaled(emb_i)
    zj = normalize_scaled(emb_j)

    # positives / T as a row-wise dot of the two scaled halves (trivial in XLA)
    pos = jnp.sum(zi * zj, axis=1)                      # (B,)  == sim_ij / T
    pos_all = jnp.concatenate([pos, pos], axis=0)       # (2B,) == [sim_ij, sim_ji]/T

    reps = jnp.concatenate([zi, zj], axis=0).astype(matmul_dtype)   # (2B, D)

    # --- Tile selection from the per-generation VMEM budget ------------------
    vmem_limit, tile_budget = _vmem_budget()
    itemsize = jnp.dtype(matmul_dtype).itemsize
    tm, tn = _pick_tiles(n, D, itemsize, tile_budget)
    if row_block is not None:
        tm = int(row_block)
    if col_block is not None:
        tn = int(col_block)
    assert tm % 8 == 0, "row_block must be a multiple of 8"
    assert tn % 128 == 0, "col_block must be a multiple of 128"

    # Pad 2B so both tile sizes divide it (padded rows are zero vectors; their
    # exp(0)=1 column contribution is subtracted exactly inside the kernel).
    N_p = _round_up(n, math.lcm(tm, tn))
    R = N_p // tm
    # Keep the 'parallel' row axis even (v7x has 2 TensorCores) when the extra
    # padded block is cheap and keeps the column tiling valid.
    if R > 1 and R % 2 == 1 and (N_p + tm) % tn == 0 and tm * 8 <= n:
        N_p += tm
        R += 1
    C = N_p // tn
    pad_rows = N_p - n
    if pad_rows:
        reps = jnp.pad(reps, ((0, pad_rows), (0, 0)))

    kernel = functools.partial(_nt_xent_denom_kernel, pad_cols=float(pad_rows))

    grid_spec = pltpu.PrefetchScalarGridSpec(
        num_scalar_prefetch=0,
        grid=(R, C),
        in_specs=[
            pl.BlockSpec((tm, D), lambda r, c: (r, 0)),   # row block (fixed over c)
            pl.BlockSpec((tn, D), lambda r, c: (c, 0)),   # column stream
        ],
        out_specs=pl.BlockSpec((tm, 1), lambda r, c: (r, 0)),
        scratch_shapes=[pltpu.VMEM((tm, 128), jnp.float32)],
    )

    log_denom = pl.pallas_call(
        kernel,
        out_shape=jax.ShapeDtypeStruct((N_p, 1), jnp.float32),
        grid_spec=grid_spec,
        compiler_params=pltpu.CompilerParams(
            dimension_semantics=("parallel", "arbitrary"),
            vmem_limit_bytes=int(vmem_limit),
        ),
    )(reps, reps)

    # -log(exp(pos/T) / denom) == log(denom) - pos/T ; mean over the 2B rows.
    loss_rows = log_denom[:n, 0] - pos_all
    return jnp.sum(loss_rows) / float(n)


def _reference_loss(emb_i, emb_j, temperature=0.5):
    """Pure-JAX reference mirroring the PyTorch module."""
    eps = 1e-12
    zi = emb_i / jnp.maximum(jnp.linalg.norm(emb_i, axis=1, keepdims=True), eps)
    zj = emb_j / jnp.maximum(jnp.linalg.norm(emb_j, axis=1, keepdims=True), eps)
    reps = jnp.concatenate([zi, zj], axis=0)
    sim = jnp.dot(reps, reps.T, precision=lax.Precision.HIGHEST)
    B = emb_i.shape[0]
    sim_ij = jnp.diagonal(sim, offset=B)
    sim_ji = jnp.diagonal(sim, offset=-B)
    positives = jnp.concatenate([sim_ij, sim_ji], axis=0)
    neg_mask = 1.0 - jnp.eye(2 * B)
    nominator = jnp.exp(positives / temperature)
    denominator = jnp.sum(neg_mask * jnp.exp(sim / temperature), axis=1)
    loss_partial = -jnp.log(nominator / denominator)
    return jnp.sum(loss_partial) / (2 * B)


if __name__ == "__main__":
    temperature = 0.5  # matches the module's default buffer value

    key = jax.random.PRNGKey(0)
    k1, k2, k3, k4 = jax.random.split(key, 4)

    # Small shapes consistent with the module: batch=8 pairs, hidden=32.
    emb_i = jax.random.normal(k1, (8, 32), dtype=jnp.float32)
    emb_j = jax.random.normal(k2, (8, 32), dtype=jnp.float32)
    ref = _reference_loss(emb_i, emb_j, temperature)

    # Default path: bf16 MXU operands / bf16 HBM streaming, f32 accumulation.
    loss_bf16 = contrastive_loss(emb_i, emb_j, temperature)
    jax.block_until_ready(loss_bf16)
    assert jnp.allclose(loss_bf16, ref, atol=3e-2, rtol=3e-2), (loss_bf16, ref)

    # Full-f32 path for a tight numerical check against the reference.
    loss_f32 = contrastive_loss(emb_i, emb_j, temperature,
                                matmul_dtype=jnp.float32)
    jax.block_until_ready(loss_f32)
    assert jnp.allclose(loss_f32, ref, atol=5e-4, rtol=5e-4), (loss_f32, ref)

    # Multi-tile grid + batch-padding path (2B=400 padded to 512, 4x4 grid).
    emb_i2 = jax.random.normal(k3, (200, 64), dtype=jnp.float32)
    emb_j2 = jax.random.normal(k4, (200, 64), dtype=jnp.float32)
    ref2 = _reference_loss(emb_i2, emb_j2, temperature)

    loss2_f32 = contrastive_loss(emb_i2, emb_j2, temperature,
                                 row_block=128, col_block=128,
                                 matmul_dtype=jnp.float32)
    jax.block_until_ready(loss2_f32)
    assert jnp.allclose(loss2_f32, ref2, atol=5e-4, rtol=5e-4), (loss2_f32, ref2)

    loss2_bf16 = contrastive_loss(emb_i2, emb_j2, temperature,
                                  row_block=128, col_block=128)
    jax.block_until_ready(loss2_bf16)
    assert jnp.allclose(loss2_bf16, ref2, atol=3e-2, rtol=3e-2), (loss2_bf16, ref2)

    print("KERNEL_OK")
</pallas_src>

<mosaic_0001>
module attributes {stable_mosaic.version = 11 : i64} {
  func.func @_nt_xent_denom_kernel(%arg0: i32, %arg1: i32, %arg2: memref<128x32xbf16, #tpu.memory_space<vmem>>, %arg3: memref<128x32xbf16, #tpu.memory_space<vmem>>, %arg4: memref<128x1xf32, #tpu.memory_space<vmem>>, %arg5: memref<128x128xf32, #tpu.memory_space<vmem>>) attributes {dimension_semantics = [#tpu.dimension_semantics<parallel>, #tpu.dimension_semantics<arbitrary>], iteration_bounds = array<i64: 1, 1>, scalar_prefetch = 0 : i64, scratch_operands = 1 : i64, tpu.core_type = #tpu.core_type<tc>, window_params = [{transform_indices = @transform_0, window_bounds = array<i64: 128, 32>}, {transform_indices = @transform_1, window_bounds = array<i64: 128, 32>}, {transform_indices = @transform_2, window_bounds = array<i64: 128, 1>}]} {
    %c0_i32 = arith.constant 0 : i32
    %0 = arith.cmpi eq, %arg1, %c0_i32 : i32
    %1 = arith.extui %0 : i1 to i32
    %c0_i32_0 = arith.constant 0 : i32
    %2 = arith.cmpi ne, %1, %c0_i32_0 : i32
    scf.if %2 {
      %cst_10 = arith.constant 0.000000e+00 : f32
      %13 = vector.broadcast %cst_10 : f32 to vector<128x128xf32>
      %c0_11 = arith.constant 0 : index
      %c0_12 = arith.constant 0 : index
      %14 = vector.load %arg5[%c0_11, %c0_12] : memref<128x128xf32, #tpu.memory_space<vmem>>, vector<128x128xf32>
      tpu.vector_store %arg5[%c0_11, %c0_12], %13 {strides = array<i32>} : memref<128x128xf32, #tpu.memory_space<vmem>>, vector<128x128xf32>,
    } else {
    }
    %c0 = arith.constant 0 : index
    %c0_1 = arith.constant 0 : index
    %3 = vector.load %arg2[%c0, %c0_1] : memref<128x32xbf16, #tpu.memory_space<vmem>>, vector<128x32xbf16>
    %c0_2 = arith.constant 0 : index
    %c0_3 = arith.constant 0 : index
    %4 = vector.load %arg3[%c0_2, %c0_3] : memref<128x32xbf16, #tpu.memory_space<vmem>>, vector<128x32xbf16>
    %cst = arith.constant dense<0.000000e+00> : vector<128x128xf32>
    %5 = tpu.matmul %3, %4, %cst {dimension_numbers = #tpu.dot_dimension_numbers<[1], [1], [0], [0], [0, 0, 1, 0], [], []>} : vector<128x32xbf16>, vector<128x32xbf16>, vector<128x128xf32> -> vector<128x128xf32>
    %6 = math.exp %5 : vector<128x128xf32>
    %c0_4 = arith.constant 0 : index
    %c0_5 = arith.constant 0 : index
    %7 = vector.load %arg5[%c0_4, %c0_5] : memref<128x128xf32, #tpu.memory_space<vmem>>, vector<128x128xf32>
    %8 = arith.addf %7, %6 : vector<128x128xf32>
    %c0_6 = arith.constant 0 : index
    %c0_7 = arith.constant 0 : index
    %9 = vector.load %arg5[%c0_6, %c0_7] : memref<128x128xf32, #tpu.memory_space<vmem>>, vector<128x128xf32>
    tpu.vector_store %arg5[%c0_6, %c0_7], %8 {strides = array<i32>} : memref<128x128xf32, #tpu.memory_space<vmem>>, vector<128x128xf32>,
    %c0_i32_8 = arith.constant 0 : i32
    %10 = arith.cmpi eq, %arg1, %c0_i32_8 : i32
    %11 = arith.extui %10 : i1 to i32
    %c0_i32_9 = arith.constant 0 : i32
    %12 = arith.cmpi ne, %11, %c0_i32_9 : i32
    scf.if %12 {
      %c0_10 = arith.constant 0 : index
      %c0_11 = arith.constant 0 : index
      %13 = vector.load %arg2[%c0_10, %c0_11] : memref<128x32xbf16, #tpu.memory_space<vmem>>, vector<128x32xbf16>
      %14 = arith.extf %13 : vector<128x32xbf16> to vector<128x32xf32>
      %15 = arith.mulf %14, %14 : vector<128x32xf32>
      %cst_12 = arith.constant dense<0.000000e+00> : vector<128xf32>
      %16 = vector.multi_reduction <add>, %15, %cst_12 [1] : vector<128x32xf32> to vector<128xf32>
      %17 = vector.shape_cast %16 : vector<128xf32> to vector<128x1xf32>
      %c0_13 = arith.constant 0 : index
      %c0_14 = arith.constant 0 : index
      %18 = vector.load %arg5[%c0_13, %c0_14] : memref<128x128xf32, #tpu.memory_space<vmem>>, vector<128x128xf32>
      %cst_15 = arith.constant dense<0.000000e+00> : vector<128xf32>
      %19 = vector.multi_reduction <add>, %18, %cst_15 [1] : vector<128x128xf32> to vector<128xf32>
      %20 = vector.shape_cast %19 : vector<128xf32> to vector<128x1xf32>
      %21 = math.exp %17 : vector<128x1xf32>
      %22 = arith.subf %20, %21 : vector<128x1xf32>
      %cst_16 = arith.constant 1.120000e+02 : f32
      %23 = vector.broadcast %cst_16 : f32 to vector<128x1xf32>
      %24 = arith.subf %22, %23 : vector<128x1xf32>
      %25 = math.log %24 : vector<128x1xf32>
      %c0_17 = arith.constant 0 : index
      %c0_18 = arith.constant 0 : index
      %26 = vector.load %arg4[%c0_17, %c0_18] : memref<128x1xf32, #tpu.memory_space<vmem>>, vector<128x1xf32>
      tpu.vector_store %arg4[%c0_17, %c0_18], %25 {strides = array<i32>} : memref<128x1xf32, #tpu.memory_space<vmem>>, vector<128x1xf32>,
    } else {
    }
    return
  }
  func.func @transform_0(%arg0: i32, %arg1: i32) -> (i32, i32) {
    %c0_i32 = arith.constant 0 : i32
    %c0_i32_0 = arith.constant 0 : i32
    return %arg0, %c0_i32 : i32, i32
  }
  func.func @transform_1(%arg0: i32, %arg1: i32) -> (i32, i32) {
    %c0_i32 = arith.constant 0 : i32
    %c0_i32_0 = arith.constant 0 : i32
    return %arg1, %c0_i32 : i32, i32
  }
  func.func @transform_2(%arg0: i32, %arg1: i32) -> (i32, i32) {
    %c0_i32 = arith.constant 0 : i32
    %c0_i32_0 = arith.constant 0 : i32
    return %arg0, %c0_i32 : i32, i32
  }
}

</mosaic_0001>

<llo_original>
// kernel: tpu_custom_call.1
$region0: #{tpu_custom_call.1}
  #allocation0 [shape = 'u32[]', space=smem, size = 0x4, offset = 0x4, fixed_abs, tag = 'smem constant byte address 0x4 - core index']
  #allocation1 [shape = 'u32[144,128]{1,0:T(1,128)}', space=vmem, size = 0x12000, scoped, tag = 'internal scratch']
  #allocation2 [shape = 'f32[128,128]{1,0:T(8,128)}', space=vmem, size = 0x10000, scoped, tag = 'scratch operand']
  %s0 = inlined_call_operand.vmem [shape: bf16[128,32], index: 0, kind: input, shape index: {}]
  %s1 = inlined_call_operand.vmem [shape: bf16[128,32], index: 1, kind: input, shape index: {}]
  %s2 = inlined_call_operand.vmem [shape: f32[128,1], index: 2, kind: output, shape index: {}]
  %s3 = sld [smem:[#allocation0]]
  $region26: #{tpu_custom_call.1} parent=0
    _
  %s5 = ssub.s32 1, %s3
  %s6 = scalar_select 0, %s5, %s3
  // Predicated region
  $region2: #{tpu_custom_call.1} parent=0 // pred_check
    _
  $region3: #{tpu_custom_call.1} parent=0 // pred_check_branch
    %8 = sbr.rel (0) target = $region5
  $region4: #{tpu_custom_call.1} parent=0 // pred_region
    _
  $region5: #{tpu_custom_call.1} parent=0 // pred_fallthru
    _
  // Predicated region
  $region6: #{tpu_custom_call.1} parent=0 // pred_check
    _
  $region7: #{tpu_custom_call.1} parent=0 // pred_check_branch
    %10 = sbr.rel (0) target = $region9
  $region8: #{tpu_custom_call.1} parent=0 // pred_region
    _
  $region9: #{tpu_custom_call.1} parent=0 // pred_fallthru
    _
  %p12 = scmp.eq.s32.totalorder 0, 0
  // Predicated region
  $region10: #{tpu_custom_call.1} parent=0 // pred_check
    %p13 = pneg %p12
  $region11: #{tpu_custom_call.1} parent=0 // pred_check_branch
    %15 = sbr.rel (%p13) target = $region13
  $region12: #{tpu_custom_call.1} parent=0 // pred_region
    %16 = vst [vmem:[#allocation2] sm:$0xff] 0.0
    %17 = vst [vmem:[#allocation2 + $0x8] sm:$0xff] 0.0
    %18 = vst [vmem:[#allocation2 + $0x10] sm:$0xff] 0.0
    %19 = vst [vmem:[#allocation2 + $0x18] sm:$0xff] 0.0
    %20 = vst [vmem:[#allocation2 + $0x20] sm:$0xff] 0.0
    %21 = vst [vmem:[#allocation2 + $0x28] sm:$0xff] 0.0
    %22 = vst [vmem:[#allocation2 + $0x30] sm:$0xff] 0.0
    %23 = vst [vmem:[#allocation2 + $0x38] sm:$0xff] 0.0
    %24 = vst [vmem:[#allocation2 + $0x40] sm:$0xff] 0.0
    %25 = vst [vmem:[#allocation2 + $0x48] sm:$0xff] 0.0
    %26 = vst [vmem:[#allocation2 + $0x50] sm:$0xff] 0.0
    %27 = vst [vmem:[#allocation2 + $0x58] sm:$0xff] 0.0
    %28 = vst [vmem:[#allocation2 + $0x60] sm:$0xff] 0.0
    %29 = vst [vmem:[#allocation2 + $0x68] sm:$0xff] 0.0
    %30 = vst [vmem:[#allocation2 + $0x70] sm:$0xff] 0.0
    %31 = vst [vmem:[#allocation2 + $0x78] sm:$0xff] 0.0
  $region13: #{tpu_custom_call.1} parent=0 // pred_fallthru
    _
  %v32 = vld [vmem:[%s0] sm:$0xf]
  %v33 = vld [vmem:[%s0 + $0x4] sm:$0xf]
  %v34 = vld [vmem:[%s0 + $0x8] sm:$0xf]
  %v35 = vld [vmem:[%s0 + $0xc] sm:$0xf]
  %v36 = vld [vmem:[%s0 + $0x10] sm:$0xf]
  %v37 = vld [vmem:[%s0 + $0x14] sm:$0xf]
  %v38 = vld [vmem:[%s0 + $0x18] sm:$0xf]
  %v39 = vld [vmem:[%s0 + $0x1c] sm:$0xf]
  %v40 = vld [vmem:[%s0 + $0x20] sm:$0xf]
  %v41 = vld [vmem:[%s0 + $0x24] sm:$0xf]
  %v42 = vld [vmem:[%s0 + $0x28] sm:$0xf]
  %v43 = vld [vmem:[%s0 + $0x2c] sm:$0xf]
  %v44 = vld [vmem:[%s0 + $0x30] sm:$0xf]
  %v45 = vld [vmem:[%s0 + $0x34] sm:$0xf]
  %v46 = vld [vmem:[%s0 + $0x38] sm:$0xf]
  %v47 = vld [vmem:[%s0 + $0x3c] sm:$0xf]
  %v48 = vld [vmem:[%s1] sm:$0xf]
  %v49 = vld [vmem:[%s1 + $0x4] sm:$0xf]
  %v50 = vld [vmem:[%s1 + $0x8] sm:$0xf]
  %v51 = vld [vmem:[%s1 + $0xc] sm:$0xf]
  %v52 = vld [vmem:[%s1 + $0x10] sm:$0xf]
  %v53 = vld [vmem:[%s1 + $0x14] sm:$0xf]
  %v54 = vld [vmem:[%s1 + $0x18] sm:$0xf]
  %v55 = vld [vmem:[%s1 + $0x1c] sm:$0xf]
  %v56 = vld [vmem:[%s1 + $0x20] sm:$0xf]
  %v57 = vld [vmem:[%s1 + $0x24] sm:$0xf]
  %v58 = vld [vmem:[%s1 + $0x28] sm:$0xf]
  %v59 = vld [vmem:[%s1 + $0x2c] sm:$0xf]
  %v60 = vld [vmem:[%s1 + $0x30] sm:$0xf]
  %v61 = vld [vmem:[%s1 + $0x34] sm:$0xf]
  %v62 = vld [vmem:[%s1 + $0x38] sm:$0xf]
  %v63 = vld [vmem:[%s1 + $0x3c] sm:$0xf]
  %v80 = vunpack.c.l.b16 %v32
  %v81 = vunpack.c.l.b16 %v33
  %v82 = vunpack.c.l.b16 %v34
  %v83 = vunpack.c.l.b16 %v35
  %v84 = vunpack.c.l.b16 %v36
  %v85 = vunpack.c.l.b16 %v37
  %v86 = vunpack.c.l.b16 %v38
  %v87 = vunpack.c.l.b16 %v39
  %v88 = vunpack.c.l.b16 %v40
  %v89 = vunpack.c.l.b16 %v41
  %v90 = vunpack.c.l.b16 %v42
  %v91 = vunpack.c.l.b16 %v43
  %v92 = vunpack.c.l.b16 %v44
  %v93 = vunpack.c.l.b16 %v45
  %v94 = vunpack.c.l.b16 %v46
  %v95 = vunpack.c.l.b16 %v47
  %v96 = vpack.c.b16 %v81, %v80
  %v97 = vpack.c.b16 %v83, %v82
  %v98 = vpack.c.b16 %v85, %v84
  %v99 = vpack.c.b16 %v87, %v86
  %v100 = vpack.c.b16 %v89, %v88
  %v101 = vpack.c.b16 %v91, %v90
  %v102 = vpack.c.b16 %v93, %v92
  %v103 = vpack.c.b16 %v95, %v94
  %v120 = vunpack.c.l.b16 %v48
  %v121 = vunpack.c.l.b16 %v49
  %v122 = vunpack.c.l.b16 %v50
  %v123 = vunpack.c.l.b16 %v51
  %v124 = vunpack.c.l.b16 %v52
  %v125 = vunpack.c.l.b16 %v53
  %v126 = vunpack.c.l.b16 %v54
  %v127 = vunpack.c.l.b16 %v55
  %v128 = vunpack.c.l.b16 %v56
  %v129 = vunpack.c.l.b16 %v57
  %v130 = vunpack.c.l.b16 %v58
  %v131 = vunpack.c.l.b16 %v59
  %v132 = vunpack.c.l.b16 %v60
  %v133 = vunpack.c.l.b16 %v61
  %v134 = vunpack.c.l.b16 %v62
  %v135 = vunpack.c.l.b16 %v63
  %v136 = vpack.c.b16 %v121, %v120
  %v137 = vpack.c.b16 %v123, %v122
  %v138 = vpack.c.b16 %v125, %v124
  %v139 = vpack.c.b16 %v127, %v126
  %v140 = vpack.c.b16 %v129, %v128
  %v141 = vpack.c.b16 %v131, %v130
  %v142 = vpack.c.b16 %v133, %v132
  %v143 = vpack.c.b16 %v135, %v134
  %vm144 = vcmask 261120
  %v146 = vsel %vm144, %v96, 0
  %v149 = vsel %vm144, %v97, 0
  %v152 = vsel %vm144, %v98, 0
  %v155 = vsel %vm144, %v99, 0
  %v158 = vsel %vm144, %v100, 0
  %v161 = vsel %vm144, %v101, 0
  %v164 = vsel %vm144, %v102, 0
  %v167 = vsel %vm144, %v103, 0
  %v170 = vsel %vm144, %v136, 0
  %v173 = vsel %vm144, %v137, 0
  %v176 = vsel %vm144, %v138, 0
  %v179 = vsel %vm144, %v139, 0
  %v182 = vsel %vm144, %v140, 0
  %v185 = vsel %vm144, %v141, 0
  %v188 = vsel %vm144, %v142, 0
  %v191 = vsel %vm144, %v143, 0
  %193 = vmatprep.subr.bf16.mxu0 0
  %194 = vmatpush1.bf16.xpose.msra.mxu0 %v191
  %195 = vmatprep.subr.bf16.mxu0 0
  %196 = vmatpush1.bf16.xpose.msra.mxu0 %v188
  %197 = vmatprep.subr.bf16.mxu0 0
  %198 = vmatpush1.bf16.xpose.msra.mxu0 %v185
  %199 = vmatprep.subr.bf16.mxu0 0
  %200 = vmatpush1.bf16.xpose.msra.mxu0 %v182
  %201 = vmatprep.subr.bf16.mxu0 0
  %202 = vmatpush1.bf16.xpose.msra.mxu0 %v179
  %203 = vmatprep.subr.bf16.mxu0 0
  %204 = vmatpush1.bf16.xpose.msra.mxu0 %v176
  %205 = vmatprep.subr.bf16.mxu0 0
  %206 = vmatpush1.bf16.xpose.msra.mxu0 %v173
  %207 = vmatprep.subr.bf16.mxu0 0
  %208 = vmatpush1.bf16.xpose.msra.mxu0 %v170
  %209 = vmatprep.subr.bf16.mxu0 0
  %210 = vmatpush2.bf16.xpose.msra.mxu0 0
  %211 = vmatprep.subr.bf16.mxu0 0
  %212 = vmatpush2.bf16.xpose.msra.mxu0 0
  %213 = vmatprep.subr.bf16.mxu0 0
  %214 = vmatpush2.bf16.xpose.msra.mxu0 0
  %215 = vmatprep.subr.bf16.mxu0 0
  %216 = vmatpush2.bf16.xpose.msra.mxu0 0
  %217 = vmatprep.subr.bf16.mxu0 0
  %218 = vmatpush2.bf16.xpose.msra.mxu0 0
  %219 = vmatprep.subr.bf16.mxu0 0
  %220 = vmatpush2.bf16.xpose.msra.mxu0 0
  %221 = vmatprep.subr.bf16.mxu0 0
  %222 = vmatpush2.bf16.xpose.msra.mxu0 0
  %223 = vmatprep.subr.bf16.mxu0 0
  %224 = vmatpush2.bf16.xpose.msra.mxu0 0
  %225 = vmatprep.mubr.bf16.mxu0 0
  %226 = vmatmul.mubr.bf16.gmra.mxu0 %v146
  %v227 = vpop.f32.mrf.mxu0
  %v228 = vadd.f32 0.0, %v227
  %v229 = vpop.f32.mrf.mxu0
  %v230 = vpop.f32.mrf.mxu0
  %v231 = vadd.f32 0.0, %v230
  %v232 = vpop.f32.mrf.mxu0
  %233 = vmatprep.mubr.bf16.mxu0 0
  %234 = vmatmul.mubr.bf16.gmra.mxu0 %v149
  %v235 = vpop.f32.mrf.mxu0
  %v236 = vadd.f32 0.0, %v235
  %v237 = vpop.f32.mrf.mxu0
  %v238 = vpop.f32.mrf.mxu0
  %v239 = vadd.f32 0.0, %v238
  %v240 = vpop.f32.mrf.mxu0
  %241 = vmatprep.mubr.bf16.mxu0 0
  %242 = vmatmul.mubr.bf16.gmra.mxu0 %v152
  %v243 = vpop.f32.mrf.mxu0
  %v244 = vadd.f32 0.0, %v243
  %v245 = vpop.f32.mrf.mxu0
  %v246 = vpop.f32.mrf.mxu0
  %v247 = vadd.f32 0.0, %v246
  %v248 = vpop.f32.mrf.mxu0
  %249 = vmatprep.mubr.bf16.mxu0 0
  %250 = vmatmul.mubr.bf16.gmra.mxu0 %v155
  %v251 = vpop.f32.mrf.mxu0
  %v252 = vadd.f32 0.0, %v251
  %v253 = vpop.f32.mrf.mxu0
  %v254 = vpop.f32.mrf.mxu0
  %v255 = vadd.f32 0.0, %v254
  %v256 = vpop.f32.mrf.mxu0
  %257 = vmatprep.mubr.bf16.mxu0 0
  %258 = vmatmul.mubr.bf16.gmra.mxu0 %v158
  %v259 = vpop.f32.mrf.mxu0
  %v260 = vadd.f32 0.0, %v259
  %v261 = vpop.f32.mrf.mxu0
  %v262 = vpop.f32.mrf.mxu0
  %v263 = vadd.f32 0.0, %v262
  %v264 = vpop.f32.mrf.mxu0
  %265 = vmatprep.mubr.bf16.mxu0 0
  %266 = vmatmul.mubr.bf16.gmra.mxu0 %v161
  %v267 = vpop.f32.mrf.mxu0
  %v268 = vadd.f32 0.0, %v267
  %v269 = vpop.f32.mrf.mxu0
  %v270 = vpop.f32.mrf.mxu0
  %v271 = vadd.f32 0.0, %v270
  %v272 = vpop.f32.mrf.mxu0
  %273 = vmatprep.mubr.bf16.mxu0 0
  %274 = vmatmul.mubr.bf16.gmra.mxu0 %v164
  %v275 = vpop.f32.mrf.mxu0
  %v276 = vadd.f32 0.0, %v275
  %v277 = vpop.f32.mrf.mxu0
  %v278 = vpop.f32.mrf.mxu0
  %v279 = vadd.f32 0.0, %v278
  %v280 = vpop.f32.mrf.mxu0
  %281 = vmatprep.mubr.bf16.mxu0 0
  %282 = vmatmul.mubr.bf16.gmra.mxu0 %v167
  %v283 = vpop.f32.mrf.mxu0
  %v284 = vadd.f32 0.0, %v283
  %v285 = vpop.f32.mrf.mxu0
  %v286 = vpop.f32.mrf.mxu0
  %v287 = vadd.f32 0.0, %v286
  %v288 = vpop.f32.mrf.mxu0
  %289 = vdwg.mxu0
  %v290 = vmul.f32 %v228, 1.442695
  %v291 = vpow.pop %v290
  %v292 = vmul.f32 %v231, 1.442695
  %v293 = vpow.pop %v292
  %v294 = vmul.f32 %v236, 1.442695
  %v295 = vpow.pop %v294
  %v296 = vmul.f32 %v239, 1.442695
  %v297 = vpow.pop %v296
  %v298 = vmul.f32 %v244, 1.442695
  %v299 = vpow.pop %v298
  %v300 = vmul.f32 %v247, 1.442695
  %v301 = vpow.pop %v300
  %v302 = vmul.f32 %v252, 1.442695
  %v303 = vpow.pop %v302
  %v304 = vmul.f32 %v255, 1.442695
  %v305 = vpow.pop %v304
  %v306 = vmul.f32 %v260, 1.442695
  %v307 = vpow.pop %v306
  %v308 = vmul.f32 %v263, 1.442695
  %v309 = vpow.pop %v308
  %v310 = vmul.f32 %v268, 1.442695
  %v311 = vpow.pop %v310
  %v312 = vmul.f32 %v271, 1.442695
  %v313 = vpow.pop %v312
  %v314 = vmul.f32 %v276, 1.442695
  %v315 = vpow.pop %v314
  %v316 = vmul.f32 %v279, 1.442695
  %v317 = vpow.pop %v316
  %v318 = vmul.f32 %v284, 1.442695
  %v319 = vpow.pop %v318
  %v320 = vmul.f32 %v287, 1.442695
  %v321 = vpow.pop %v320
  %v322 = vld [vmem:[#allocation2] sm:$0xff]
  %v323 = vld [vmem:[#allocation2 + $0x8] sm:$0xff]
  %v324 = vld [vmem:[#allocation2 + $0x10] sm:$0xff]
  %v325 = vld [vmem:[#allocation2 + $0x18] sm:$0xff]
  %v326 = vld [vmem:[#allocation2 + $0x20] sm:$0xff]
  %v327 = vld [vmem:[#allocation2 + $0x28] sm:$0xff]
  %v328 = vld [vmem:[#allocation2 + $0x30] sm:$0xff]
  %v329 = vld [vmem:[#allocation2 + $0x38] sm:$0xff]
  %v330 = vld [vmem:[#allocation2 + $0x40] sm:$0xff]
  %v331 = vld [vmem:[#allocation2 + $0x48] sm:$0xff]
  %v332 = vld [vmem:[#allocation2 + $0x50] sm:$0xff]
  %v333 = vld [vmem:[#allocation2 + $0x58] sm:$0xff]
  %v334 = vld [vmem:[#allocation2 + $0x60] sm:$0xff]
  %v335 = vld [vmem:[#allocation2 + $0x68] sm:$0xff]
  %v336 = vld [vmem:[#allocation2 + $0x70] sm:$0xff]
  %v337 = vld [vmem:[#allocation2 + $0x78] sm:$0xff]
  %v338 = vadd.f32 %v322, %v291
  %v339 = vadd.f32 %v323, %v293
  %v340 = vadd.f32 %v324, %v295
  %v341 = vadd.f32 %v325, %v297
  %v342 = vadd.f32 %v326, %v299
  %v343 = vadd.f32 %v327, %v301
  %v344 = vadd.f32 %v328, %v303
  %v345 = vadd.f32 %v329, %v305
  %v346 = vadd.f32 %v330, %v307
  %v347 = vadd.f32 %v331, %v309
  %v348 = vadd.f32 %v332, %v311
  %v349 = vadd.f32 %v333, %v313
  %v350 = vadd.f32 %v334, %v315
  %v351 = vadd.f32 %v335, %v317
  %v352 = vadd.f32 %v336, %v319
  %v353 = vadd.f32 %v337, %v321
  %354 = vst [vmem:[#allocation2] sm:$0xff] %v338
  %355 = vst [vmem:[#allocation2 + $0x8] sm:$0xff] %v339
  %356 = vst [vmem:[#allocation2 + $0x10] sm:$0xff] %v340
  %357 = vst [vmem:[#allocation2 + $0x18] sm:$0xff] %v341
  %358 = vst [vmem:[#allocation2 + $0x20] sm:$0xff] %v342
  %359 = vst [vmem:[#allocation2 + $0x28] sm:$0xff] %v343
  %360 = vst [vmem:[#allocation2 + $0x30] sm:$0xff] %v344
  %361 = vst [vmem:[#allocation2 + $0x38] sm:$0xff] %v345
  %362 = vst [vmem:[#allocation2 + $0x40] sm:$0xff] %v346
  %363 = vst [vmem:[#allocation2 + $0x48] sm:$0xff] %v347
  %364 = vst [vmem:[#allocation2 + $0x50] sm:$0xff] %v348
  %365 = vst [vmem:[#allocation2 + $0x58] sm:$0xff] %v349
  %366 = vst [vmem:[#allocation2 + $0x60] sm:$0xff] %v350
  %367 = vst [vmem:[#allocation2 + $0x68] sm:$0xff] %v351
  %368 = vst [vmem:[#allocation2 + $0x70] sm:$0xff] %v352
  %369 = vst [vmem:[#allocation2 + $0x78] sm:$0xff] %v353
  // Predicated region
  $region14: #{tpu_custom_call.1} parent=0 // pred_check
    %p370 = pneg %p12
  $region15: #{tpu_custom_call.1} parent=0 // pred_check_branch
    %372 = sbr.rel (%p370) target = $region17
  $region16: #{tpu_custom_call.1} parent=0 // pred_region
    %v373 = vld [vmem:[%s0] sm:$0xf]
    %v374 = vld [vmem:[%s0 + $0x4] sm:$0xf]
    %v375 = vld [vmem:[%s0 + $0x8] sm:$0xf]
    %v376 = vld [vmem:[%s0 + $0xc] sm:$0xf]
    %v377 = vld [vmem:[%s0 + $0x10] sm:$0xf]
    %v378 = vld [vmem:[%s0 + $0x14] sm:$0xf]
    %v379 = vld [vmem:[%s0 + $0x18] sm:$0xf]
    %v380 = vld [vmem:[%s0 + $0x1c] sm:$0xf]
    %v381 = vld [vmem:[%s0 + $0x20] sm:$0xf]
    %v382 = vld [vmem:[%s0 + $0x24] sm:$0xf]
    %v383 = vld [vmem:[%s0 + $0x28] sm:$0xf]
    %v384 = vld [vmem:[%s0 + $0x2c] sm:$0xf]
    %v385 = vld [vmem:[%s0 + $0x30] sm:$0xf]
    %v386 = vld [vmem:[%s0 + $0x34] sm:$0xf]
    %v387 = vld [vmem:[%s0 + $0x38] sm:$0xf]
    %v388 = vld [vmem:[%s0 + $0x3c] sm:$0xf]
    %v389 = vunpack.c.l.bf16 %v373
    %v390 = vunpack.c.l.bf16 %v374
    %v391 = vunpack.c.l.bf16 %v375
    %v392 = vunpack.c.l.bf16 %v376
    %v393 = vunpack.c.l.bf16 %v377
    %v394 = vunpack.c.l.bf16 %v378
    %v395 = vunpack.c.l.bf16 %v379
    %v396 = vunpack.c.l.bf16 %v380
    %v397 = vunpack.c.l.bf16 %v381
    %v398 = vunpack.c.l.bf16 %v382
    %v399 = vunpack.c.l.bf16 %v383
    %v400 = vunpack.c.l.bf16 %v384
    %v401 = vunpack.c.l.bf16 %v385
    %v402 = vunpack.c.l.bf16 %v386
    %v403 = vunpack.c.l.bf16 %v387
    %v404 = vunpack.c.l.bf16 %v388
    %v405 = vmul.f32 %v389, %v389
    %v406 = vmul.f32 %v390, %v390
    %v407 = vmul.f32 %v391, %v391
    %v408 = vmul.f32 %v392, %v392
    %v409 = vmul.f32 %v393, %v393
    %v410 = vmul.f32 %v394, %v394
    %v411 = vmul.f32 %v395, %v395
    %v412 = vmul.f32 %v396, %v396
    %v413 = vmul.f32 %v397, %v397
    %v414 = vmul.f32 %v398, %v398
    %v415 = vmul.f32 %v399, %v399
    %v416 = vmul.f32 %v400, %v400
    %v417 = vmul.f32 %v401, %v401
    %v418 = vmul.f32 %v402, %v402
    %v419 = vmul.f32 %v403, %v403
    %v420 = vmul.f32 %v404, %v404
    %v421 = vsel %vm144, %v405, 0.0
    %422 = vadd.xlane.f32.xlu0 %v421
    %v423 = vpop.xlane.xlu0 %422
    %v424 = vsel %vm144, %v406, 0.0
    %425 = vadd.xlane.f32.xlu0 %v424
    %v426 = vpop.xlane.xlu0 %425
    %v427 = vsel %vm144, %v407, 0.0
    %428 = vadd.xlane.f32.xlu0 %v427
    %v429 = vpop.xlane.xlu0 %428
    %v430 = vsel %vm144, %v408, 0.0
    %431 = vadd.xlane.f32.xlu0 %v430
    %v432 = vpop.xlane.xlu0 %431
    %v433 = vsel %vm144, %v409, 0.0
    %434 = vadd.xlane.f32.xlu0 %v433
    %v435 = vpop.xlane.xlu0 %434
    %v436 = vsel %vm144, %v410, 0.0
    %437 = vadd.xlane.f32.xlu0 %v436
    %v438 = vpop.xlane.xlu0 %437
    %v439 = vsel %vm144, %v411, 0.0
    %440 = vadd.xlane.f32.xlu0 %v439
    %v441 = vpop.xlane.xlu0 %440
    %v442 = vsel %vm144, %v412, 0.0
    %443 = vadd.xlane.f32.xlu0 %v442
    %v444 = vpop.xlane.xlu0 %443
    %v445 = vsel %vm144, %v413, 0.0
    %446 = vadd.xlane.f32.xlu0 %v445
    %v447 = vpop.xlane.xlu0 %446
    %v448 = vsel %vm144, %v414, 0.0
    %449 = vadd.xlane.f32.xlu0 %v448
    %v450 = vpop.xlane.xlu0 %449
    %v451 = vsel %vm144, %v415, 0.0
    %452 = vadd.xlane.f32.xlu0 %v451
    %v453 = vpop.xlane.xlu0 %452
    %v454 = vsel %vm144, %v416, 0.0
    %455 = vadd.xlane.f32.xlu0 %v454
    %v456 = vpop.xlane.xlu0 %455
    %v457 = vsel %vm144, %v417, 0.0
    %458 = vadd.xlane.f32.xlu0 %v457
    %v459 = vpop.xlane.xlu0 %458
    %v460 = vsel %vm144, %v418, 0.0
    %461 = vadd.xlane.f32.xlu0 %v460
    %v462 = vpop.xlane.xlu0 %461
    %v463 = vsel %vm144, %v419, 0.0
    %464 = vadd.xlane.f32.xlu0 %v463
    %v465 = vpop.xlane.xlu0 %464
    %v466 = vsel %vm144, %v420, 0.0
    %467 = vadd.xlane.f32.xlu0 %v466
    %v468 = vpop.xlane.xlu0 %467
    %v469 = vld [vmem:[#allocation2] sm:$0xff]
    %v470 = vld [vmem:[#allocation2 + $0x8] sm:$0xff]
    %v471 = vld [vmem:[#allocation2 + $0x10] sm:$0xff]
    %v472 = vld [vmem:[#allocation2 + $0x18] sm:$0xff]
    %v473 = vld [vmem:[#allocation2 + $0x20] sm:$0xff]
    %v474 = vld [vmem:[#allocation2 + $0x28] sm:$0xff]
    %v475 = vld [vmem:[#allocation2 + $0x30] sm:$0xff]
    %v476 = vld [vmem:[#allocation2 + $0x38] sm:$0xff]
    %v477 = vld [vmem:[#allocation2 + $0x40] sm:$0xff]
    %v478 = vld [vmem:[#allocation2 + $0x48] sm:$0xff]
    %v479 = vld [vmem:[#allocation2 + $0x50] sm:$0xff]
    %v480 = vld [vmem:[#allocation2 + $0x58] sm:$0xff]
    %v481 = vld [vmem:[#allocation2 + $0x60] sm:$0xff]
    %v482 = vld [vmem:[#allocation2 + $0x68] sm:$0xff]
    %v483 = vld [vmem:[#allocation2 + $0x70] sm:$0xff]
    %v484 = vld [vmem:[#allocation2 + $0x78] sm:$0xff]
    %485 = vadd.xlane.f32.xlu0 %v469
    %v486 = vpop.xlane.xlu0 %485
    %487 = vadd.xlane.f32.xlu0 %v470
    %v488 = vpop.xlane.xlu0 %487
    %489 = vadd.xlane.f32.xlu0 %v471
    %v490 = vpop.xlane.xlu0 %489
    %491 = vadd.xlane.f32.xlu0 %v472
    %v492 = vpop.xlane.xlu0 %491
    %493 = vadd.xlane.f32.xlu0 %v473
    %v494 = vpop.xlane.xlu0 %493
    %495 = vadd.xlane.f32.xlu0 %v474
    %v496 = vpop.xlane.xlu0 %495
    %497 = vadd.xlane.f32.xlu0 %v475
    %v498 = vpop.xlane.xlu0 %497
    %499 = vadd.xlane.f32.xlu0 %v476
    %v500 = vpop.xlane.xlu0 %499
    %501 = vadd.xlane.f32.xlu0 %v477
    %v502 = vpop.xlane.xlu0 %501
    %503 = vadd.xlane.f32.xlu0 %v478
    %v504 = vpop.xlane.xlu0 %503
    %505 = vadd.xlane.f32.xlu0 %v479
    %v506 = vpop.xlane.xlu0 %505
    %507 = vadd.xlane.f32.xlu0 %v480
    %v508 = vpop.xlane.xlu0 %507
    %509 = vadd.xlane.f32.xlu0 %v481
    %v510 = vpop.xlane.xlu0 %509
    %511 = vadd.xlane.f32.xlu0 %v482
    %v512 = vpop.xlane.xlu0 %511
    %513 = vadd.xlane.f32.xlu0 %v483
    %v514 = vpop.xlane.xlu0 %513
    %515 = vadd.xlane.f32.xlu0 %v484
    %v516 = vpop.xlane.xlu0 %515
    %v517 = vmul.f32 %v423, 1.442695
    %v518 = vpow.pop %v517
    %v519 = vmul.f32 %v426, 1.442695
    %v520 = vpow.pop %v519
    %v521 = vmul.f32 %v429, 1.442695
    %v522 = vpow.pop %v521
    %v523 = vmul.f32 %v432, 1.442695
    %v524 = vpow.pop %v523
    %v525 = vmul.f32 %v435, 1.442695
    %v526 = vpow.pop %v525
    %v527 = vmul.f32 %v438, 1.442695
    %v528 = vpow.pop %v527
    %v529 = vmul.f32 %v441, 1.442695
    %v530 = vpow.pop %v529
    %v531 = vmul.f32 %v444, 1.442695
    %v532 = vpow.pop %v531
    %v533 = vmul.f32 %v447, 1.442695
    %v534 = vpow.pop %v533
    %v535 = vmul.f32 %v450, 1.442695
    %v536 = vpow.pop %v535
    %v537 = vmul.f32 %v453, 1.442695
    %v538 = vpow.pop %v537
    %v539 = vmul.f32 %v456, 1.442695
    %v540 = vpow.pop %v539
    %v541 = vmul.f32 %v459, 1.442695
    %v542 = vpow.pop %v541
    %v543 = vmul.f32 %v462, 1.442695
    %v544 = vpow.pop %v543
    %v545 = vmul.f32 %v465, 1.442695
    %v546 = vpow.pop %v545
    %v547 = vmul.f32 %v468, 1.442695
    %v548 = vpow.pop %v547
    %v549 = vsub.f32 %v486, %v518
    %v550 = vsub.f32 %v488, %v520
    %v551 = vsub.f32 %v490, %v522
    %v552 = vsub.f32 %v492, %v524
    %v553 = vsub.f32 %v494, %v526
    %v554 = vsub.f32 %v496, %v528
    %v555 = vsub.f32 %v498, %v530
    %v556 = vsub.f32 %v500, %v532
    %v557 = vsub.f32 %v502, %v534
    %v558 = vsub.f32 %v504, %v536
    %v559 = vsub.f32 %v506, %v538
    %v560 = vsub.f32 %v508, %v540
    %v561 = vsub.f32 %v510, %v542
    %v562 = vsub.f32 %v512, %v544
    %v563 = vsub.f32 %v514, %v546
    %v564 = vsub.f32 %v516, %v548
    %v565 = vsub.f32 %v549, 112.0
    %v566 = vsub.f32 %v550, 112.0
    %v567 = vsub.f32 %v551, 112.0
    %v568 = vsub.f32 %v552, 112.0
    %v569 = vsub.f32 %v553, 112.0
    %v570 = vsub.f32 %v554, 112.0
    %v571 = vsub.f32 %v555, 112.0
    %v572 = vsub.f32 %v556, 112.0
    %v573 = vsub.f32 %v557, 112.0
    %v574 = vsub.f32 %v558, 112.0
    %v575 = vsub.f32 %v559, 112.0
    %v576 = vsub.f32 %v560, 112.0
    %v577 = vsub.f32 %v561, 112.0
    %v578 = vsub.f32 %v562, 112.0
    %v579 = vsub.f32 %v563, 112.0
    %v580 = vsub.f32 %v564, 112.0
    %v581 = vlog2.pop %v565
    %v582 = vmul.f32 %v581, 0.6931472
    %v583 = vlog2.pop %v566
    %v584 = vmul.f32 %v583, 0.6931472
    %v585 = vlog2.pop %v567
    %v586 = vmul.f32 %v585, 0.6931472
    %v587 = vlog2.pop %v568
    %v588 = vmul.f32 %v587, 0.6931472
    %v589 = vlog2.pop %v569
    %v590 = vmul.f32 %v589, 0.6931472
    %v591 = vlog2.pop %v570
    %v592 = vmul.f32 %v591, 0.6931472
    %v593 = vlog2.pop %v571
    %v594 = vmul.f32 %v593, 0.6931472
    %v595 = vlog2.pop %v572
    %v596 = vmul.f32 %v595, 0.6931472
    %v597 = vlog2.pop %v573
    %v598 = vmul.f32 %v597, 0.6931472
    %v599 = vlog2.pop %v574
    %v600 = vmul.f32 %v599, 0.6931472
    %v601 = vlog2.pop %v575
    %v602 = vmul.f32 %v601, 0.6931472
    %v603 = vlog2.pop %v576
    %v604 = vmul.f32 %v603, 0.6931472
    %v605 = vlog2.pop %v577
    %v606 = vmul.f32 %v605, 0.6931472
    %v607 = vlog2.pop %v578
    %v608 = vmul.f32 %v607, 0.6931472
    %v609 = vlog2.pop %v579
    %v610 = vmul.f32 %v609, 0.6931472
    %v611 = vlog2.pop %v580
    %v612 = vmul.f32 %v611, 0.6931472
    %vm613 = vcmask 7168
    %614 = vst.msk [vmem:[%s2] sm:$0xff] %vm613, %v582
    %615 = vst.msk [vmem:[%s2 + $0x8] sm:$0xff] %vm613, %v584
    %616 = vst.msk [vmem:[%s2 + $0x10] sm:$0xff] %vm613, %v586
    %617 = vst.msk [vmem:[%s2 + $0x18] sm:$0xff] %vm613, %v588
    %618 = vst.msk [vmem:[%s2 + $0x20] sm:$0xff] %vm613, %v590
    %619 = vst.msk [vmem:[%s2 + $0x28] sm:$0xff] %vm613, %v592
    %620 = vst.msk [vmem:[%s2 + $0x30] sm:$0xff] %vm613, %v594
    %621 = vst.msk [vmem:[%s2 + $0x38] sm:$0xff] %vm613, %v596
    %622 = vst.msk [vmem:[%s2 + $0x40] sm:$0xff] %vm613, %v598
    %623 = vst.msk [vmem:[%s2 + $0x48] sm:$0xff] %vm613, %v600
    %624 = vst.msk [vmem:[%s2 + $0x50] sm:$0xff] %vm613, %v602
    %625 = vst.msk [vmem:[%s2 + $0x58] sm:$0xff] %vm613, %v604
    %626 = vst.msk [vmem:[%s2 + $0x60] sm:$0xff] %vm613, %v606
    %627 = vst.msk [vmem:[%s2 + $0x68] sm:$0xff] %vm613, %v608
    %628 = vst.msk [vmem:[%s2 + $0x70] sm:$0xff] %vm613, %v610
    %629 = vst.msk [vmem:[%s2 + $0x78] sm:$0xff] %vm613, %v612
  $region17: #{tpu_custom_call.1} parent=0 // pred_fallthru
    _
  // Predicated region
  $region18: #{tpu_custom_call.1} parent=0 // pred_check
    _
  $region19: #{tpu_custom_call.1} parent=0 // pred_check_branch
    %631 = sbr.rel (0) target = $region21
  $region20: #{tpu_custom_call.1} parent=0 // pred_region
    _
  $region21: #{tpu_custom_call.1} parent=0 // pred_fallthru
    _
  // Predicated region
  $region22: #{tpu_custom_call.1} parent=0 // pred_check
    _
  $region23: #{tpu_custom_call.1} parent=0 // pred_check_branch
    %633 = sbr.rel (0) target = $region25
  $region24: #{tpu_custom_call.1} parent=0 // pred_region
    _
  $region25: #{tpu_custom_call.1} parent=0 // pred_fallthru
    _

</llo_original>
